<compile_context>
chip_gen: v6e
topology: v6e:2x2x1
jax: 0.10.0
libtpu: 0.0.40
codegen_flags: <defaults>
</compile_context>

<pallas_src>
import functools
from typing import NamedTuple

import jax
import jax.numpy as jnp
from jax.experimental import pallas as pl
from jax.experimental.pallas import tpu as pltpu


def _round_up(x, m):
    return (x + m - 1) // m * m


# ---------------------------------------------------------------------------
# Kernel
# ---------------------------------------------------------------------------
def actor_critic_kernel(obs_ref, w1_ref, b1_ref, wh_ref, bh_ref, out_ref, *,
                        num_actions):
    # fc1 + ReLU.  MXU operands may be bf16; accumulation + bias are f32.
    # Hidden dim is zero-padded, so padded lanes are relu(0) = 0 and contribute
    # nothing to the fused head matmul.
    x = obs_ref[...]
    h = jnp.dot(x, w1_ref[...], preferred_element_type=jnp.float32) + b1_ref[...]
    h = jnp.maximum(h, 0.0)

    # Fused actor+critic head: single MXU pass, lane-dense (TB, 128) result.
    head = (jnp.dot(h.astype(wh_ref.dtype), wh_ref[...],
                    preferred_element_type=jnp.float32) + bh_ref[...])

    lane = jax.lax.broadcasted_iota(jnp.int32, head.shape, dimension=1)
    is_action = lane < num_actions

    # Numerically-stable softmax restricted to the action lanes only.
    # Exact divide (not approx reciprocal) so probs sum to 1 to f32 precision.
    logits = jnp.where(is_action, head, jnp.float32(-1e30))
    m = jnp.max(logits, axis=-1, keepdims=True)
    e = jnp.where(is_action, jnp.exp(logits - m), 0.0)
    probs = e / jnp.sum(e, axis=-1, keepdims=True)

    # lanes [0, A): action probs ; lane A: critic value ; lanes > A: zeros.
    out_ref[...] = jnp.where(is_action, probs, head)


# ---------------------------------------------------------------------------
# One-time parameter preparation (hoisted out of the hot path)
# ---------------------------------------------------------------------------
class ActorCriticParams(NamedTuple):
    w1p: jax.Array   # (OBS, HID_P)   mxu_dtype
    b1p: jax.Array   # (1, HID_P)     f32
    wh: jax.Array    # (HID_P, 128)   mxu_dtype  (actor cols + critic in lane A)
    bh: jax.Array    # (1, 128)       f32
    num_actions: int


def prepare_params(w1, b1, wa, ba, wc, bc, *, mxu_dtype=jnp.bfloat16):
    """Pad fc1 to a lane-dense hidden width and fuse actor+critic heads.

    Call ONCE (e.g. after each optimizer step), not per forward.
    w1: (OBS, HID); b1: (1, HID); wa: (HID, A); ba: (1, A); wc: (HID, 1);
    bc: (1, 1).
    """
    OBS, HID = w1.shape
    A = wa.shape[1]
    assert A + 1 <= 128, "fused head assumes num_actions + 1 <= 128"
    f32 = jnp.float32
    HID_P = _round_up(HID, 128)
    OUT_P = 128

    w1p = jnp.zeros((OBS, HID_P), f32).at[:, :HID].set(w1.astype(f32))
    b1p = jnp.zeros((1, HID_P), f32).at[:, :HID].set(b1.astype(f32).reshape(1, HID))

    wh = jnp.zeros((HID_P, OUT_P), f32)
    wh = wh.at[:HID, :A].set(wa.astype(f32)).at[:HID, A].set(wc[:, 0].astype(f32))
    bh = jnp.zeros((1, OUT_P), f32)
    bh = bh.at[0, :A].set(ba.reshape(-1).astype(f32)).at[0, A].set(
        bc.reshape(-1)[0].astype(f32))

    return ActorCriticParams(
        w1p=w1p.astype(mxu_dtype), b1p=b1p,
        wh=wh.astype(mxu_dtype), bh=bh, num_actions=int(A))


# ---------------------------------------------------------------------------
# Forward wrapper
# ---------------------------------------------------------------------------
def _resident_spec(block_shape):
    """BlockSpec for a VMEM-resident operand (constant index_map).

    Single-buffered (no double-buffering needed since the block never changes);
    falls back to the default pipelining on JAX versions without pipeline_mode.
    """
    try:
        return pl.BlockSpec(block_shape, lambda i: (0, 0),
                            pipeline_mode=pl.Buffered(1))
    except (TypeError, AttributeError, ValueError):
        return pl.BlockSpec(block_shape, lambda i: (0, 0))


def actor_critic_forward(obs, params, *, block_b=512, vmem_limit_bytes=None):
    """obs: (B, OBS) ; params: ActorCriticParams from prepare_params().

    Returns (action_probs (B, A), critic_value (B, 1))."""
    B, OBS = obs.shape
    w1p, b1p, wh, bh, A = params
    assert w1p.shape[0] == OBS
    HID_P = w1p.shape[1]
    OUT_P = wh.shape[1]
    mdt = w1p.dtype
    itm = jnp.dtype(mdt).itemsize
    f32 = jnp.float32

    # Batch tiling: TB rows per grid step (multiple of 16 so bf16 obs tiles are
    # sublane-aligned); pad B with zero rows.  With block_b >= B the grid
    # collapses to a single step (best for small rollout batches).
    TB = min(_round_up(B, 16), _round_up(block_b, 16))
    Bp = _round_up(B, TB)
    obs_p = obs.astype(mdt)
    if Bp != B:
        obs_p = jnp.zeros((Bp, OBS), mdt).at[:B].set(obs_p)
    grid = (Bp // TB,)

    # VMEM budget: obs/out tiles double-buffered, resident weights counted once
    # (Buffered(1)); 2x headroom, clamped to v7x's 64 MiB physical VMEM.
    if vmem_limit_bytes is None:
        need = (2 * TB * OBS * itm + 2 * TB * OUT_P * 4      # pipelined tiles
                + OBS * HID_P * itm + HID_P * 4              # resident fc1
                + HID_P * OUT_P * itm + OUT_P * 4)           # resident head
        vmem_limit_bytes = min(64 << 20, max(16 << 20, 2 * need))

    cost = pl.CostEstimate(
        flops=2 * Bp * (OBS * HID_P + HID_P * OUT_P),
        transcendentals=Bp * OUT_P,
        bytes_accessed=(Bp * OBS * itm + OBS * HID_P * itm + HID_P * 4
                        + HID_P * OUT_P * itm + OUT_P * 4 + Bp * OUT_P * 4),
    )

    out = pl.pallas_call(
        functools.partial(actor_critic_kernel, num_actions=A),
        out_shape=jax.ShapeDtypeStruct((Bp, OUT_P), f32),
        grid=grid,
        in_specs=[
            pl.BlockSpec((TB, OBS), lambda i: (i, 0)),   # obs tile (pipelined)
            _resident_spec((OBS, HID_P)),                # VMEM-resident weights
            _resident_spec((1, HID_P)),
            _resident_spec((HID_P, OUT_P)),
            _resident_spec((1, OUT_P)),
        ],
        out_specs=pl.BlockSpec((TB, OUT_P), lambda i: (i, 0)),
        compiler_params=pltpu.CompilerParams(
            dimension_semantics=("parallel",),           # v7x: shard steps on 2 TCs
            vmem_limit_bytes=int(vmem_limit_bytes),
        ),
        cost_estimate=cost,
    )(obs_p, w1p, b1p, wh, bh)

    probs = out[:B, :A]
    value = out[:B, A:A + 1]
    return probs, value


# ---------------------------------------------------------------------------
# Init + pure-JAX reference
# ---------------------------------------------------------------------------
def init_params(key, num_observations, num_actions, num_hidden):
    """Deterministic init mimicking nn.Linear's U(-1/sqrt(fan_in), 1/sqrt(fan_in))."""
    ks = jax.random.split(key, 6)

    def linear(kw, kb, fan_in, fan_out):
        bound = 1.0 / jnp.sqrt(jnp.float32(fan_in))
        w = jax.random.uniform(kw, (fan_in, fan_out), jnp.float32, -bound, bound)
        b = jax.random.uniform(kb, (1, fan_out), jnp.float32, -bound, bound)
        return w, b

    w1, b1 = linear(ks[0], ks[1], num_observations, num_hidden)
    wa, ba = linear(ks[2], ks[3], num_hidden, num_actions)
    wc, bc = linear(ks[4], ks[5], num_hidden, 1)
    return w1, b1, wa, ba, wc, bc


def reference_forward(obs, w1, b1, wa, ba, wc, bc):
    h = jnp.maximum(obs @ w1 + b1, 0.0)
    probs = jax.nn.softmax(h @ wa + ba, axis=-1)
    value = h @ wc + bc
    return probs, value


if __name__ == "__main__":
    # CartPole-v0: 4 observations, 2 actions; hidden=32; small rollout batch.
    B, OBS, ACT, HID = 20, 4, 2, 32

    key = jax.random.PRNGKey(0)
    k_obs, k_params = jax.random.split(key)
    observations = jax.random.normal(k_obs, (B, OBS), jnp.float32)
    raw_params = init_params(k_params, OBS, ACT, HID)
    ref_probs, ref_value = reference_forward(observations, *raw_params)

    # --- f32 MXU path: validates kernel structure against the reference. ---
    params_f32 = prepare_params(*raw_params, mxu_dtype=jnp.float32)
    p32, v32 = actor_critic_forward(observations, params_f32)
    p32 = jax.block_until_ready(p32)
    v32 = jax.block_until_ready(v32)
    assert p32.shape == (B, ACT) and v32.shape == (B, 1)
    assert jnp.allclose(p32, ref_probs, atol=2e-3, rtol=2e-3), "actor mismatch (f32)"
    assert jnp.allclose(v32, ref_value, atol=2e-3, rtol=2e-3), "critic mismatch (f32)"
    assert jnp.allclose(jnp.sum(p32, axis=-1), 1.0, atol=1e-5), "softmax not normalized (f32)"

    # --- default bf16-MXU path (f32 accumulation / softmax / critic math). ---
    params = prepare_params(*raw_params)          # one-time prep, bf16 MXU operands
    probs, value = actor_critic_forward(observations, params)   # grid=(1,)
    probs = jax.block_until_ready(probs)
    value = jax.block_until_ready(value)
    assert probs.shape == (B, ACT) and value.shape == (B, 1)
    assert jnp.allclose(probs, ref_probs, atol=2e-2, rtol=2e-2), "actor mismatch (bf16)"
    assert jnp.allclose(value, ref_value, atol=2e-2, rtol=2e-2), "critic mismatch (bf16)"
    assert jnp.allclose(jnp.sum(probs, axis=-1), 1.0, atol=1e-5), "softmax not normalized"

    # --- multi-step grid path (exercises batch tiling + zero-row padding). ---
    probs2, value2 = actor_critic_forward(observations, params, block_b=16)
    probs2 = jax.block_until_ready(probs2)
    value2 = jax.block_until_ready(value2)
    assert jnp.allclose(probs2, probs, atol=1e-5, rtol=1e-5), "tiling mismatch (probs)"
    assert jnp.allclose(value2, value, atol=1e-5, rtol=1e-5), "tiling mismatch (value)"

    print("KERNEL_OK")
</pallas_src>

<mosaic_0001>
module attributes {stable_mosaic.version = 11 : i64} {
  func.func @actor_critic_kernel(%arg0: i32, %arg1: memref<32x4xf32, #tpu.memory_space<vmem>>, %arg2: memref<4x128xf32, #tpu.memory_space<vmem>>, %arg3: memref<1x128xf32, #tpu.memory_space<vmem>>, %arg4: memref<128x128xf32, #tpu.memory_space<vmem>>, %arg5: memref<1x128xf32, #tpu.memory_space<vmem>>, %arg6: memref<32x128xf32, #tpu.memory_space<vmem>>) attributes {dimension_semantics = [#tpu.dimension_semantics<parallel>], iteration_bounds = array<i64: 1>, scalar_prefetch = 0 : i64, scratch_operands = 0 : i64, tpu.core_type = #tpu.core_type<tc>, window_params = [{transform_indices = @transform_0, window_bounds = array<i64: 32, 4>}, {pipeline_mode = #tpu.pipeline_mode<synchronous>, transform_indices = @transform_1, window_bounds = array<i64: 4, 128>}, {pipeline_mode = #tpu.pipeline_mode<synchronous>, transform_indices = @transform_2, window_bounds = array<i64: 1, 128>}, {pipeline_mode = #tpu.pipeline_mode<synchronous>, transform_indices = @transform_3, window_bounds = array<i64: 128, 128>}, {pipeline_mode = #tpu.pipeline_mode<synchronous>, transform_indices = @transform_4, window_bounds = array<i64: 1, 128>}, {transform_indices = @transform_5, window_bounds = array<i64: 32, 128>}]} {
    %c0 = arith.constant 0 : index
    %c0_0 = arith.constant 0 : index
    %0 = vector.load %arg1[%c0, %c0_0] : memref<32x4xf32, #tpu.memory_space<vmem>>, vector<32x4xf32>
    %c0_1 = arith.constant 0 : index
    %c0_2 = arith.constant 0 : index
    %1 = vector.load %arg2[%c0_1, %c0_2] : memref<4x128xf32, #tpu.memory_space<vmem>>, vector<4x128xf32>
    %cst = arith.constant dense<0.000000e+00> : vector<32x128xf32>
    %2 = tpu.matmul %0, %1, %cst {dimension_numbers = #tpu.dot_dimension_numbers<[1], [0], [0], [1], [0, 0, 1, 1], [], []>} : vector<32x4xf32>, vector<4x128xf32>, vector<32x128xf32> -> vector<32x128xf32>
    %c0_3 = arith.constant 0 : index
    %c0_4 = arith.constant 0 : index
    %3 = vector.load %arg3[%c0_3, %c0_4] : memref<1x128xf32, #tpu.memory_space<vmem>>, vector<1x128xf32>
    %4 = vector.broadcast %3 : vector<1x128xf32> to vector<32x128xf32>
    %5 = arith.addf %2, %4 : vector<32x128xf32>
    %cst_5 = arith.constant 0.000000e+00 : f32
    %6 = vector.broadcast %cst_5 : f32 to vector<32x128xf32>
    %7 = arith.maximumf %5, %6 : vector<32x128xf32>
    %c0_6 = arith.constant 0 : index
    %c0_7 = arith.constant 0 : index
    %8 = vector.load %arg4[%c0_6, %c0_7] : memref<128x128xf32, #tpu.memory_space<vmem>>, vector<128x128xf32>
    %cst_8 = arith.constant dense<0.000000e+00> : vector<32x128xf32>
    %9 = tpu.matmul %7, %8, %cst_8 {dimension_numbers = #tpu.dot_dimension_numbers<[1], [0], [0], [1], [0, 0, 1, 1], [], []>} : vector<32x128xf32>, vector<128x128xf32>, vector<32x128xf32> -> vector<32x128xf32>
    %c0_9 = arith.constant 0 : index
    %c0_10 = arith.constant 0 : index
    %10 = vector.load %arg5[%c0_9, %c0_10] : memref<1x128xf32, #tpu.memory_space<vmem>>, vector<1x128xf32>
    %11 = vector.broadcast %10 : vector<1x128xf32> to vector<32x128xf32>
    %12 = arith.addf %9, %11 : vector<32x128xf32>
    %13 = tpu.iota {dimensions = array<i32: 1>} : vector<32x128xi32>
    %c2_i32 = arith.constant 2 : i32
    %14 = vector.broadcast %c2_i32 : i32 to vector<32x128xi32>
    %15 = arith.cmpi slt, %13, %14 : vector<32x128xi32>
    %cst_11 = arith.constant -1.000000e+30 : f32
    %16 = vector.broadcast %cst_11 : f32 to vector<32x128xf32>
    %17 = arith.select %15, %12, %16 : vector<32x128xi1>, vector<32x128xf32>
    %cst_12 = arith.constant dense<0xFF800000> : vector<32xf32>
    %18 = vector.multi_reduction <maximumf>, %17, %cst_12 [1] : vector<32x128xf32> to vector<32xf32>
    %19 = vector.shape_cast %18 : vector<32xf32> to vector<32x1xf32>
    %20 = vector.broadcast %19 : vector<32x1xf32> to vector<32x128xf32>
    %21 = arith.subf %17, %20 : vector<32x128xf32>
    %22 = math.exp %21 : vector<32x128xf32>
    %cst_13 = arith.constant 0.000000e+00 : f32
    %23 = vector.broadcast %cst_13 : f32 to vector<32x128xf32>
    %24 = arith.select %15, %22, %23 : vector<32x128xi1>, vector<32x128xf32>
    %cst_14 = arith.constant dense<0.000000e+00> : vector<32xf32>
    %25 = vector.multi_reduction <add>, %24, %cst_14 [1] : vector<32x128xf32> to vector<32xf32>
    %26 = vector.shape_cast %25 : vector<32xf32> to vector<32x1xf32>
    %27 = vector.broadcast %26 : vector<32x1xf32> to vector<32x128xf32>
    %28 = arith.divf %24, %27 : vector<32x128xf32>
    %29 = arith.select %15, %28, %12 : vector<32x128xi1>, vector<32x128xf32>
    %c0_15 = arith.constant 0 : index
    %c0_16 = arith.constant 0 : index
    %30 = vector.load %arg6[%c0_15, %c0_16] : memref<32x128xf32, #tpu.memory_space<vmem>>, vector<32x128xf32>
    tpu.vector_store %arg6[%c0_15, %c0_16], %29 {strides = array<i32>} : memref<32x128xf32, #tpu.memory_space<vmem>>, vector<32x128xf32>,
    return
  }
  func.func @transform_0(%arg0: i32) -> (i32, i32) {
    %c0_i32 = arith.constant 0 : i32
    %c0_i32_0 = arith.constant 0 : i32
    return %arg0, %c0_i32 : i32, i32
  }
  func.func @transform_1(%arg0: i32) -> (i32, i32) {
    %c0_i32 = arith.constant 0 : i32
    %c0_i32_0 = arith.constant 0 : i32
    %c0_i32_1 = arith.constant 0 : i32
    return %c0_i32, %c0_i32_0 : i32, i32
  }
  func.func @transform_2(%arg0: i32) -> (i32, i32) {
    %c0_i32 = arith.constant 0 : i32
    %c0_i32_0 = arith.constant 0 : i32
    %c0_i32_1 = arith.constant 0 : i32
    return %c0_i32, %c0_i32_0 : i32, i32
  }
  func.func @transform_3(%arg0: i32) -> (i32, i32) {
    %c0_i32 = arith.constant 0 : i32
    %c0_i32_0 = arith.constant 0 : i32
    %c0_i32_1 = arith.constant 0 : i32
    return %c0_i32, %c0_i32_0 : i32, i32
  }
  func.func @transform_4(%arg0: i32) -> (i32, i32) {
    %c0_i32 = arith.constant 0 : i32
    %c0_i32_0 = arith.constant 0 : i32
    %c0_i32_1 = arith.constant 0 : i32
    return %c0_i32, %c0_i32_0 : i32, i32
  }
  func.func @transform_5(%arg0: i32) -> (i32, i32) {
    %c0_i32 = arith.constant 0 : i32
    %c0_i32_0 = arith.constant 0 : i32
    return %arg0, %c0_i32 : i32, i32
  }
}

</mosaic_0001>

<llo_original>
// kernel: tpu_custom_call.1
$region0: #{tpu_custom_call.1}
  #allocation0 [shape = 'u32[]', space=smem, size = 0x4, offset = 0x4, fixed_abs, tag = 'smem constant byte address 0x4 - core index']
  #allocation1 [shape = 'u32[144,128]{1,0:T(1,128)}', space=vmem, size = 0x12000, scoped, tag = 'internal scratch']
  %s0 = inlined_call_operand.vmem [shape: f32[32,4], index: 0, kind: input, shape index: {}]
  %s1 = inlined_call_operand.vmem [shape: f32[4,128], index: 1, kind: input, shape index: {}]
  %s2 = inlined_call_operand.vmem [shape: f32[1,128], index: 2, kind: input, shape index: {}]
  %s3 = inlined_call_operand.hbm [shape: f32[128,128], index: 3, kind: input, shape index: {}]
  %s4 = inlined_call_operand.vmem [shape: f32[1,128], index: 4, kind: input, shape index: {}]
  %s5 = inlined_call_operand.hbm [shape: f32[32,128], index: 5, kind: output, shape index: {}]
  %s6 = sld [smem:[#allocation0]]
  $region34: #{tpu_custom_call.1} parent=0
    _
  %s8 = ssub.s32 1, %s6
  %s9 = scalar_select 0, %s8, %s6
  $region1: #{tpu_custom_call.1} parent=0
    #allocation2 [shape = 'u8[65536]{0}', space=vmem, size = 0x10000, scoped, tag = 'input window, operand 3, single buffered']
    #allocation3 [shape = 's32[1]{0}', space=sflag, size = 0x4, scoped, tag = 'scoped memory for tpu_custom_call.1']
    #allocation4 [shape = 's32[1]{0}', space=sflag, size = 0x4, scoped, tag = 'scoped memory for tpu_custom_call.1']
    #allocation5 [shape = 'u8[16384]{0}', space=vmem, size = 0x4000, scoped, tag = 'output window, operand 0, single buffered']
    %10 = vsyncpa [#allocation3], 0
    %11 = vsyncpa [#allocation4], 0
    // Predicated region
    $region2: #{tpu_custom_call.1} parent=1 // pred_check
      _
    $region3: #{tpu_custom_call.1} parent=1 // pred_check_branch
      %13 = sbr.rel (0) target = $region5
    $region4: #{tpu_custom_call.1} parent=1 // pred_region
      _
    $region5: #{tpu_custom_call.1} parent=1 // pred_fallthru
      _
    // Predicated region
    $region6: #{tpu_custom_call.1} parent=1 // pred_check
      _
    $region7: #{tpu_custom_call.1} parent=1 // pred_check_branch
      %15 = sbr.rel (0) target = $region9
    $region8: #{tpu_custom_call.1} parent=1 // pred_region
      _
    $region9: #{tpu_custom_call.1} parent=1 // pred_fallthru
      _
    // Predicated region
    $region10: #{tpu_custom_call.1} parent=1 // pred_check
      _
    $region11: #{tpu_custom_call.1} parent=1 // pred_check_branch
      %17 = sbr.rel (0) target = $region13
    $region12: #{tpu_custom_call.1} parent=1 // pred_region
      _
    $region13: #{tpu_custom_call.1} parent=1 // pred_fallthru
      _
    // Predicated region
    $region14: #{tpu_custom_call.1} parent=1 // pred_check
      _
    $region15: #{tpu_custom_call.1} parent=1 // pred_check_branch
      %19 = sbr.rel (0) target = $region17
    $region16: #{tpu_custom_call.1} parent=1 // pred_region
      %s21 = ssub.s32 2048, 2048
      %22 = vsyncadd [#allocation3], %s21
      %s23 = sshll.u32 [#allocation2], 4
      %s24 = int_to_ptr.vmem [resolvable:$true] %s23
      %29 = dma.hbm_to_vmem [thread:$0]  %s3, 2048, %s24, [#allocation3], 128, 128, 8
    $region17: #{tpu_custom_call.1} parent=1 // pred_fallthru
      _
    // Predicated region
    $region18: #{tpu_custom_call.1} parent=1 // pred_check
      _
    $region19: #{tpu_custom_call.1} parent=1 // pred_check_branch
      %31 = sbr.rel (0) target = $region21
    $region20: #{tpu_custom_call.1} parent=1 // pred_region
      _
    $region21: #{tpu_custom_call.1} parent=1 // pred_fallthru
      _
    // Predicated region
    $region22: #{tpu_custom_call.1} parent=1 // pred_check
      _
    $region23: #{tpu_custom_call.1} parent=1 // pred_check_branch
      %33 = sbr.rel (0) target = $region25
    $region24: #{tpu_custom_call.1} parent=1 // pred_region
      %34 = dma.done [#allocation3], 2048
    $region25: #{tpu_custom_call.1} parent=1 // pred_fallthru
      _
    %v35 = vld [vmem:[%s0] sm:$0xff]
    %v36 = vld [vmem:[%s0 + $0x8] sm:$0xff]
    %v37 = vld [vmem:[%s0 + $0x10] sm:$0xff]
    %v38 = vld [vmem:[%s0 + $0x18] sm:$0xff]
    %v39 = vld [vmem:[%s1] sm:$0xf]
    %v40 = vld [vmem:[%s2] sm:$0x1]
    %v42 = vlaneseq
    %v43 = vshrl.u32 %v42, 7
    %v44 = vsub.s32 0, %v43
    %v45 = vrot.slane %v40, %v44
    %vm47 = vcmask 31744
    %v49 = vsel %vm47, %v35, 0
    %v52 = vsel %vm47, %v36, 0
    %v55 = vsel %vm47, %v37, 0
    %v58 = vsel %vm47, %v38, 0
    %vm60 = vcmask 1043456
    %v62 = vsel %vm60, %v39, 0
    %64 = vmatprep.subr.mxu0 0.0
    %65 = vmatpush1.msra.mxu0 0.0
    %66 = vmatprep.subr.mxu0 0.0
    %67 = vmatpush1.msra.mxu0 0.0
    %68 = vmatprep.subr.mxu0 0.0
    %69 = vmatpush1.msra.mxu0 0.0
    %70 = vmatprep.subr.mxu0 0.0
    %71 = vmatpush1.msra.mxu0 0.0
    %72 = vmatprep.subr.mxu0 0.0
    %73 = vmatpush1.msra.mxu0 0.0
    %74 = vmatprep.subr.mxu0 0.0
    %75 = vmatpush1.msra.mxu0 0.0
    %76 = vmatprep.subr.mxu0 0.0
    %77 = vmatpush1.msra.mxu0 0.0
    %78 = vmatprep.subr.mxu0 0.0
    %79 = vmatpush1.msra.mxu0 0.0
    %80 = vmatprep.subr.mxu0 0.0
    %81 = vmatpush1.msra.mxu0 0.0
    %82 = vmatprep.subr.mxu0 0.0
    %83 = vmatpush1.msra.mxu0 0.0
    %84 = vmatprep.subr.mxu0 0.0
    %85 = vmatpush1.msra.mxu0 0.0
    %86 = vmatprep.subr.mxu0 0.0
    %87 = vmatpush1.msra.mxu0 0.0
    %88 = vmatprep.subr.mxu0 0.0
    %89 = vmatpush1.msra.mxu0 0.0
    %90 = vmatprep.subr.mxu0 0.0
    %91 = vmatpush1.msra.mxu0 0.0
    %92 = vmatprep.subr.mxu0 0.0
    %93 = vmatpush1.msra.mxu0 0.0
    %94 = vmatprep.subr.mxu0 0.0
    %95 = vmatpush1.msra.mxu0 %v62
    %96 = vmatprep.subr.mxu0 0.0
    %97 = vmatpush2.msra.mxu0 0.0
    %98 = vmatprep.subr.mxu0 0.0
    %99 = vmatpush2.msra.mxu0 0.0
    %100 = vmatprep.subr.mxu0 0.0
    %101 = vmatpush2.msra.mxu0 0.0
    %102 = vmatprep.subr.mxu0 0.0
    %103 = vmatpush2.msra.mxu0 0.0
    %104 = vmatprep.subr.mxu0 0.0
    %105 = vmatpush2.msra.mxu0 0.0
    %106 = vmatprep.subr.mxu0 0.0
    %107 = vmatpush2.msra.mxu0 0.0
    %108 = vmatprep.subr.mxu0 0.0
    %109 = vmatpush2.msra.mxu0 0.0
    %110 = vmatprep.subr.mxu0 0.0
    %111 = vmatpush2.msra.mxu0 0.0
    %112 = vmatprep.subr.mxu0 0.0
    %113 = vmatpush2.msra.mxu0 0.0
    %114 = vmatprep.subr.mxu0 0.0
    %115 = vmatpush2.msra.mxu0 0.0
    %116 = vmatprep.subr.mxu0 0.0
    %117 = vmatpush2.msra.mxu0 0.0
    %118 = vmatprep.subr.mxu0 0.0
    %119 = vmatpush2.msra.mxu0 0.0
    %120 = vmatprep.subr.mxu0 0.0
    %121 = vmatpush2.msra.mxu0 0.0
    %122 = vmatprep.subr.mxu0 0.0
    %123 = vmatpush2.msra.mxu0 0.0
    %124 = vmatprep.subr.mxu0 0.0
    %125 = vmatpush2.msra.mxu0 0.0
    %126 = vmatprep.subr.mxu0 0.0
    %127 = vmatpush2.msra.mxu0 0.0
    %128 = vmatprep.mubr.f32.mxu0 0.0
    %129 = vmatmul.mubr.f32.gmra.mxu0 %v49
    %v130 = vpop.f32.mrf.mxu0
    %v131 = vadd.f32 %v45, %v130
    %v132 = vpop.f32.mrf.mxu0
    %133 = vmatprep.mubr.f32.mxu0 0.0
    %134 = vmatmul.mubr.f32.gmra.mxu0 %v52
    %v135 = vpop.f32.mrf.mxu0
    %v136 = vadd.f32 %v45, %v135
    %v137 = vpop.f32.mrf.mxu0
    %138 = vmatprep.mubr.f32.mxu0 0.0
    %139 = vmatmul.mubr.f32.gmra.mxu0 %v55
    %v140 = vpop.f32.mrf.mxu0
    %v141 = vadd.f32 %v45, %v140
    %v142 = vpop.f32.mrf.mxu0
    %143 = vmatprep.mubr.f32.mxu0 0.0
    %144 = vmatmul.mubr.f32.gmra.mxu0 %v58
    %v145 = vpop.f32.mrf.mxu0
    %v146 = vadd.f32 %v45, %v145
    %v147 = vpop.f32.mrf.mxu0
    %148 = vdwg.mxu0
    %v149 = vmax.f32 %v131, 0.0
    %v150 = vmax.f32 %v136, 0.0
    %v151 = vmax.f32 %v141, 0.0
    %v152 = vmax.f32 %v146, 0.0
    %v153 = vld [vmem:[#allocation2] sm:$0xff]
    %v154 = vld [vmem:[#allocation2 + $0x8] sm:$0xff]
    %v155 = vld [vmem:[#allocation2 + $0x10] sm:$0xff]
    %v156 = vld [vmem:[#allocation2 + $0x18] sm:$0xff]
    %v157 = vld [vmem:[#allocation2 + $0x20] sm:$0xff]
    %v158 = vld [vmem:[#allocation2 + $0x28] sm:$0xff]
    %v159 = vld [vmem:[#allocation2 + $0x30] sm:$0xff]
    %v160 = vld [vmem:[#allocation2 + $0x38] sm:$0xff]
    %v161 = vld [vmem:[#allocation2 + $0x40] sm:$0xff]
    %v162 = vld [vmem:[#allocation2 + $0x48] sm:$0xff]
    %v163 = vld [vmem:[#allocation2 + $0x50] sm:$0xff]
    %v164 = vld [vmem:[#allocation2 + $0x58] sm:$0xff]
    %v165 = vld [vmem:[#allocation2 + $0x60] sm:$0xff]
    %v166 = vld [vmem:[#allocation2 + $0x68] sm:$0xff]
    %v167 = vld [vmem:[#allocation2 + $0x70] sm:$0xff]
    %v168 = vld [vmem:[#allocation2 + $0x78] sm:$0xff]
    %v169 = vld [vmem:[%s4] sm:$0x1]
    %v171 = vlaneseq
    %v172 = vshrl.u32 %v171, 7
    %v173 = vsub.s32 0, %v172
    %v174 = vrot.slane %v169, %v173
    %176 = vmatprep.subr.mxu0 0.0
    %177 = vmatpush1.msra.mxu0 %v168
    %178 = vmatprep.subr.mxu0 0.0
    %179 = vmatpush1.msra.mxu0 %v167
    %180 = vmatprep.subr.mxu0 0.0
    %181 = vmatpush1.msra.mxu0 %v166
    %182 = vmatprep.subr.mxu0 0.0
    %183 = vmatpush1.msra.mxu0 %v165
    %184 = vmatprep.subr.mxu0 0.0
    %185 = vmatpush1.msra.mxu0 %v164
    %186 = vmatprep.subr.mxu0 0.0
    %187 = vmatpush1.msra.mxu0 %v163
    %188 = vmatprep.subr.mxu0 0.0
    %189 = vmatpush1.msra.mxu0 %v162
    %190 = vmatprep.subr.mxu0 0.0
    %191 = vmatpush1.msra.mxu0 %v161
    %192 = vmatprep.subr.mxu0 0.0
    %193 = vmatpush1.msra.mxu0 %v160
    %194 = vmatprep.subr.mxu0 0.0
    %195 = vmatpush1.msra.mxu0 %v159
    %196 = vmatprep.subr.mxu0 0.0
    %197 = vmatpush1.msra.mxu0 %v158
    %198 = vmatprep.subr.mxu0 0.0
    %199 = vmatpush1.msra.mxu0 %v157
    %200 = vmatprep.subr.mxu0 0.0
    %201 = vmatpush1.msra.mxu0 %v156
    %202 = vmatprep.subr.mxu0 0.0
    %203 = vmatpush1.msra.mxu0 %v155
    %204 = vmatprep.subr.mxu0 0.0
    %205 = vmatpush1.msra.mxu0 %v154
    %206 = vmatprep.subr.mxu0 0.0
    %207 = vmatpush1.msra.mxu0 %v153
    %208 = vmatprep.subr.mxu0 0.0
    %209 = vmatpush2.msra.mxu0 0.0
    %210 = vmatprep.subr.mxu0 0.0
    %211 = vmatpush2.msra.mxu0 0.0
    %212 = vmatprep.subr.mxu0 0.0
    %213 = vmatpush2.msra.mxu0 0.0
    %214 = vmatprep.subr.mxu0 0.0
    %215 = vmatpush2.msra.mxu0 0.0
    %216 = vmatprep.subr.mxu0 0.0
    %217 = vmatpush2.msra.mxu0 0.0
    %218 = vmatprep.subr.mxu0 0.0
    %219 = vmatpush2.msra.mxu0 0.0
    %220 = vmatprep.subr.mxu0 0.0
    %221 = vmatpush2.msra.mxu0 0.0
    %222 = vmatprep.subr.mxu0 0.0
    %223 = vmatpush2.msra.mxu0 0.0
    %224 = vmatprep.subr.mxu0 0.0
    %225 = vmatpush2.msra.mxu0 0.0
    %226 = vmatprep.subr.mxu0 0.0
    %227 = vmatpush2.msra.mxu0 0.0
    %228 = vmatprep.subr.mxu0 0.0
    %229 = vmatpush2.msra.mxu0 0.0
    %230 = vmatprep.subr.mxu0 0.0
    %231 = vmatpush2.msra.mxu0 0.0
    %232 = vmatprep.subr.mxu0 0.0
    %233 = vmatpush2.msra.mxu0 0.0
    %234 = vmatprep.subr.mxu0 0.0
    %235 = vmatpush2.msra.mxu0 0.0
    %236 = vmatprep.subr.mxu0 0.0
    %237 = vmatpush2.msra.mxu0 0.0
    %238 = vmatprep.subr.mxu0 0.0
    %239 = vmatpush2.msra.mxu0 0.0
    %240 = vmatprep.mubr.f32.mxu0 0.0
    %241 = vmatmul.mubr.f32.gmra.mxu0 %v149
    %v242 = vpop.f32.mrf.mxu0
    %v243 = vadd.f32 %v174, %v242
    %v244 = vpop.f32.mrf.mxu0
    %245 = vmatprep.mubr.f32.mxu0 0.0
    %246 = vmatmul.mubr.f32.gmra.mxu0 %v150
    %v247 = vpop.f32.mrf.mxu0
    %v248 = vadd.f32 %v174, %v247
    %v249 = vpop.f32.mrf.mxu0
    %250 = vmatprep.mubr.f32.mxu0 0.0
    %251 = vmatmul.mubr.f32.gmra.mxu0 %v151
    %v252 = vpop.f32.mrf.mxu0
    %v253 = vadd.f32 %v174, %v252
    %v254 = vpop.f32.mrf.mxu0
    %255 = vmatprep.mubr.f32.mxu0 0.0
    %256 = vmatmul.mubr.f32.gmra.mxu0 %v152
    %v257 = vpop.f32.mrf.mxu0
    %v258 = vadd.f32 %v174, %v257
    %v259 = vpop.f32.mrf.mxu0
    %260 = vdwg.mxu0
    %v261 = vlaneseq
    %v262 = vand.u32 %v261, 127
    %vm263 = vcmp.lt.s32.totalorder %v262, 2
    %v264 = vsel %vm263, %v243, -1e+30
    %v265 = vsel %vm263, %v248, -1e+30
    %v266 = vsel %vm263, %v253, -1e+30
    %v267 = vsel %vm263, %v258, -1e+30
    %268 = vmax.xlane.f32.xlu0 %v264
    %v269 = vpop.xlane.xlu0 %268
    %270 = vmax.xlane.f32.xlu0 %v265
    %v271 = vpop.xlane.xlu0 %270
    %272 = vmax.xlane.f32.xlu0 %v266
    %v273 = vpop.xlane.xlu0 %272
    %274 = vmax.xlane.f32.xlu0 %v267
    %v275 = vpop.xlane.xlu0 %274
    %v276 = vsub.f32 %v264, %v269
    %v277 = vsub.f32 %v265, %v271
    %v278 = vsub.f32 %v266, %v273
    %v279 = vsub.f32 %v267, %v275
    %v280 = vmul.f32 %v276, 1.442695
    %v281 = vpow.pop %v280
    %v282 = vmul.f32 %v277, 1.442695
    %v283 = vpow.pop %v282
    %v284 = vmul.f32 %v278, 1.442695
    %v285 = vpow.pop %v284
    %v286 = vmul.f32 %v279, 1.442695
    %v287 = vpow.pop %v286
    %v288 = vsel %vm263, %v281, 0.0
    %v289 = vsel %vm263, %v283, 0.0
    %v290 = vsel %vm263, %v285, 0.0
    %v291 = vsel %vm263, %v287, 0.0
    %292 = vadd.xlane.f32.xlu0 %v288
    %v293 = vpop.xlane.xlu0 %292
    %294 = vadd.xlane.f32.xlu0 %v289
    %v295 = vpop.xlane.xlu0 %294
    %296 = vadd.xlane.f32.xlu0 %v290
    %v297 = vpop.xlane.xlu0 %296
    %298 = vadd.xlane.f32.xlu0 %v291
    %v299 = vpop.xlane.xlu0 %298
    %v300 = vrcp.pop %v293
    %v301 = vmul.f32 %v288, %v300
    %v302 = vrcp.pop %v295
    %v303 = vmul.f32 %v289, %v302
    %v304 = vrcp.pop %v297
    %v305 = vmul.f32 %v290, %v304
    %v306 = vrcp.pop %v299
    %v307 = vmul.f32 %v291, %v306
    %v308 = vsel %vm263, %v301, %v243
    %v309 = vsel %vm263, %v303, %v248
    %v310 = vsel %vm263, %v305, %v253
    %v311 = vsel %vm263, %v307, %v258
    %312 = vst [vmem:[#allocation5] sm:$0xff] %v308
    %313 = vst [vmem:[#allocation5 + $0x8] sm:$0xff] %v309
    %314 = vst [vmem:[#allocation5 + $0x10] sm:$0xff] %v310
    %315 = vst [vmem:[#allocation5 + $0x18] sm:$0xff] %v311
    // Predicated region
    $region26: #{tpu_custom_call.1} parent=1 // pred_check
      _
    $region27: #{tpu_custom_call.1} parent=1 // pred_check_branch
      %317 = sbr.rel (0) target = $region29
    $region28: #{tpu_custom_call.1} parent=1 // pred_region
      %s319 = ssub.s32 512, 512
      %320 = vsyncadd [#allocation4], %s319
      %s321 = sshll.u32 [#allocation5], 4
      %s322 = int_to_ptr.vmem [resolvable:$true] %s321
      %327 = dma.vmem_to_hbm [thread:$0]  %s322, 512, %s5, [#allocation4], 128, 128, 8
    $region29: #{tpu_custom_call.1} parent=1 // pred_fallthru
      _
    // Predicated region
    $region30: #{tpu_custom_call.1} parent=1 // pred_check
      _
    $region31: #{tpu_custom_call.1} parent=1 // pred_check_branch
      %329 = sbr.rel (0) target = $region33
    $region32: #{tpu_custom_call.1} parent=1 // pred_region
      %330 = dma.done [#allocation4], 512
    $region33: #{tpu_custom_call.1} parent=1 // pred_fallthru
      _
    %331 = vsyncpa [#allocation3], 1
    %332 = vsyncpa [#allocation4], 1

</llo_original>
